<compile_context>
chip_gen: v7x
topology: tpu7x:2x2x1
jax: 0.10.0
libtpu: 0.0.40
codegen_flags: <defaults>
</compile_context>

<pallas_src>
import functools

import jax
import jax.numpy as jnp
from jax import lax
from jax.experimental import pallas as pl
from jax.experimental.pallas import tpu as pltpu


# --------------------------------------------------------------------------- #
# Kernel                                                                      #
# --------------------------------------------------------------------------- #
def _eca_kernel(cw_ref, x_ref, w1t_ref, b1_ref, w2t_ref, b2_ref, o_ref, acc_ref,
                *, hw_total, hw_tile, conv_chunk):
    # cw_ref : (k,)   f32 SMEM   conv1d taps
    # x_ref  : (TB, C, hw_tile)  input tile (batch tile, all channels, spatial slice)
    # w1t_ref: (C, Cr) f32       fc1 weight, transposed, hidden dim zero-padded
    # b1_ref : (1, Cr) f32       fc1 bias, zero-padded
    # w2t_ref: (Cr, C) f32       fc2 weight, transposed, zero-padded
    # b2_ref : (1, C)  f32       fc2 bias
    # o_ref  : (TB, 1, C)        sigmoid attention for this batch tile
    # acc_ref: (TB, C) f32       running spatial sum (scratch)
    TB, C, _ = x_ref.shape
    k = cw_ref.shape[0]
    pad = (k - 1) // 2

    hw = pl.program_id(1)
    n_hw = pl.num_programs(1)

    @pl.when(hw == 0)
    def _():
        acc_ref[...] = jnp.zeros_like(acc_ref)

    x = x_ref[...].astype(jnp.float32)                           # (TB, C, hw_tile)

    if hw_total % hw_tile == 0:
        # No spatial remainder: plain accumulate on every step, no masking.
        acc_ref[...] += jnp.sum(x, axis=-1)
    else:
        # Mask only on the (single) partial last tile; all other steps are
        # an unmasked VPU add + XLU reduce.
        @pl.when(hw < n_hw - 1)
        def _():
            acc_ref[...] += jnp.sum(x, axis=-1)

        @pl.when(hw == n_hw - 1)
        def _():
            col = lax.broadcasted_iota(jnp.int32, x.shape, 2)
            xm = jnp.where(hw * hw_tile + col < hw_total, x, 0.0)
            acc_ref[...] += jnp.sum(xm, axis=-1)

    # ---- Epilogue: only on the last spatial step of this batch tile. -------
    @pl.when(hw == n_hw - 1)
    def _():
        p = acc_ref[...] * (1.0 / hw_total)                      # avg pool (TB, C)

        # Factored fc path: (TB,C)@(C,Cr) then (TB,Cr)@(Cr,C); exact because
        # the padded hidden columns/rows and biases are zero.
        h = jnp.dot(p, w1t_ref[...], preferred_element_type=jnp.float32) + b1_ref[...]
        ga = jnp.dot(h, w2t_ref[...], preferred_element_type=jnp.float32) + b2_ref[...]

        # k-tap conv along channels with zero padding: y[:, c] = sum_j w[j] *
        # p[:, c + j - pad].  Realized as p @ band, where band is built in
        # VMEM from iota + k scalar selects (taps read from SMEM) — no dense
        # (C, C) weight ever lives in HBM.  Chunked over output channels so
        # the transient band stays small for large C.
        src = lax.broadcasted_iota(jnp.int32, (C, conv_chunk), 0)   # source channel
        dst0 = lax.broadcasted_iota(jnp.int32, (C, conv_chunk), 1)  # output channel offset
        for c0 in range(0, C, conv_chunk):                          # static, small
            band = jnp.zeros((C, conv_chunk), jnp.float32)
            for j in range(k):                                      # static, tiny k
                band = jnp.where(src - (dst0 + c0) == (j - pad), cw_ref[j], band)
            y = jnp.dot(p, band, preferred_element_type=jnp.float32)   # (TB, chunk)
            out = jax.nn.sigmoid(ga[:, c0:c0 + conv_chunk] + y)
            o_ref[:, :, c0:c0 + conv_chunk] = (
                out.reshape(TB, 1, conv_chunk).astype(o_ref.dtype))


# --------------------------------------------------------------------------- #
# Tiling / budgeting helpers                                                  #
# --------------------------------------------------------------------------- #
def _round_up(v, m):
    return ((v + m - 1) // m) * m


def _physical_vmem_bytes():
    try:
        return int(pltpu.get_tpu_info().vmem_capacity_bytes)
    except Exception:
        return 64 << 20      # conservative default (v7x per-TensorCore VMEM)


def _choose_conv_chunk(C, max_bytes=2 << 20):
    """Output-channel chunk for the in-kernel band matrix (4*C*chunk <= cap)."""
    if 4 * C * C <= max_bytes or C % 128 != 0:
        return C
    target = max(128, (max_bytes // (4 * C)) // 128 * 128)
    best = 128
    d = 128
    while d <= C:
        if C % d == 0 and d <= target:
            best = d
        d += 128
    return best


def _choose_batch_tile(B, C, itemsize, per_buf_cap):
    """Largest divisor of B such that a 128-wide spatial slab fits the x-buffer
    budget and (for B >= 2) at least two parallel grid blocks remain for the
    two v7x TensorCores."""
    cap = max(1, per_buf_cap // max(1, C * 128 * itemsize))
    limit = B // 2 if B >= 2 else 1
    limit = max(1, min(limit, cap))
    best = 1
    for tb in range(1, limit + 1):
        if B % tb == 0:
            best = tb
    return best


def _choose_spatial_tile(HW, bytes_per_col, per_buf_budget):
    """Largest spatial tile (multiple of 128, or full HW) within the per-buffer
    byte budget; prefers a divisor of HW near the budget so no tail mask is
    needed."""
    if HW * bytes_per_col <= per_buf_budget:
        return HW
    tile = max(128, (per_buf_budget // max(1, bytes_per_col)) // 128 * 128)
    if tile >= HW:
        return HW
    lo = max(128, tile - (tile // 8) // 128 * 128)
    for t in range(tile, lo - 1, -128):
        if HW % t == 0:
            return t
    return tile


# --------------------------------------------------------------------------- #
# Wrapper                                                                     #
# --------------------------------------------------------------------------- #
def _eca_forward(x, conv_w, fc1_w, fc1_b, fc2_w, fc2_b):
    """x: (B, C, H, W). Returns the sigmoid attention map of shape (B, C, 1, 1)."""
    B, C, H, W = x.shape
    HW = H * W
    x_flat = x.reshape(B, C, HW)
    itemsize = x.dtype.itemsize

    # ---- Parameters (no O(C^3) fold; everything stays factored) ------------
    conv_taps = conv_w.reshape(-1).astype(jnp.float32)            # (k,) -> SMEM
    hidden = max(1, C // 4)
    Cr = _round_up(hidden, 128)                                   # lane-pad bottleneck
    w1t = fc1_w.reshape(hidden, C).T.astype(jnp.float32)          # (C, hidden)
    w2t = fc2_w.reshape(C, hidden).T.astype(jnp.float32)          # (hidden, C)
    b1 = fc1_b.reshape(1, hidden).astype(jnp.float32)
    b2 = fc2_b.reshape(1, C).astype(jnp.float32)
    if Cr != hidden:
        w1t = jnp.pad(w1t, ((0, 0), (0, Cr - hidden)))
        w2t = jnp.pad(w2t, ((0, Cr - hidden), (0, 0)))
        b1 = jnp.pad(b1, ((0, 0), (0, Cr - hidden)))

    conv_chunk = _choose_conv_chunk(C)

    # ---- Per-generation VMEM budgeting --------------------------------------
    phys_vmem = _physical_vmem_bytes()
    vmem_ceiling = (phys_vmem * 7) // 8                           # leave headroom
    per_buf_cap = (6 << 20) if phys_vmem <= (64 << 20) else (14 << 20)

    TB = _choose_batch_tile(B, C, itemsize, per_buf_cap)

    # Fixed VMEM demand (independent of the spatial tile): double-buffered fc
    # params and output block, the in-kernel band temporaries, the accumulator
    # scratch, plus slack for compiler temporaries.
    fixed_bytes = (2 * 4 * (C * Cr + Cr * C + Cr + C)             # fc weights + biases
                   + 4 * 4 * C * conv_chunk                       # band-build transients
                   + 4 * TB * C                                   # acc scratch
                   + 2 * TB * C * itemsize                        # output block (x2)
                   + (2 << 20))                                   # slack

    per_buf_budget = max(TB * C * 128 * itemsize,
                         min(per_buf_cap, (vmem_ceiling - fixed_bytes) // 2))
    hw_tile = _choose_spatial_tile(HW, TB * C * itemsize, per_buf_budget)
    n_hw = pl.cdiv(HW, hw_tile)

    x_block_bytes = TB * C * hw_tile * itemsize
    vmem_limit = int(min(max(16 << 20, 2 * x_block_bytes + fixed_bytes),
                         phys_vmem - (4 << 20)))

    kernel = functools.partial(_eca_kernel, hw_total=HW, hw_tile=hw_tile,
                               conv_chunk=conv_chunk)

    cost = pl.CostEstimate(
        flops=int(B * C * HW + 2 * B * (2 * C * Cr + C * C)),
        transcendentals=int(B * C),
        bytes_accessed=int(x.size * itemsize + 8 * C * Cr + 8 * C
                           + B * C * itemsize),
    )

    out = pl.pallas_call(
        kernel,
        out_shape=jax.ShapeDtypeStruct((B, 1, C), x.dtype),
        grid_spec=pltpu.PrefetchScalarGridSpec(
            num_scalar_prefetch=0,
            grid=(B // TB, n_hw),
            in_specs=[
                pl.BlockSpec(memory_space=pltpu.MemorySpace.SMEM),       # conv taps (k,)
                pl.BlockSpec((TB, C, hw_tile), lambda b, h: (b, 0, h)),  # x tile
                pl.BlockSpec((C, Cr), lambda b, h: (0, 0)),              # W1^T (padded)
                pl.BlockSpec((1, Cr), lambda b, h: (0, 0)),              # b1   (padded)
                pl.BlockSpec((Cr, C), lambda b, h: (0, 0)),              # W2^T (padded)
                pl.BlockSpec((1, C), lambda b, h: (0, 0)),               # b2
            ],
            out_specs=pl.BlockSpec((TB, 1, C), lambda b, h: (b, 0, 0)),
            scratch_shapes=[pltpu.VMEM((TB, C), jnp.float32)],
        ),
        compiler_params=pltpu.CompilerParams(
            dimension_semantics=("parallel", "arbitrary"),
            vmem_limit_bytes=vmem_limit,
        ),
        cost_estimate=cost,
    )(conv_taps, x_flat, w1t, b1, w2t, b2)
    return out.reshape(B, C, 1, 1)


# jit so parameter reshapes/pads and the trace happen once per shape, not per call.
eca_forward = jax.jit(_eca_forward)


# --------------------------------------------------------------------------- #
# Pure-JAX reference (un-fused, for validation)                               #
# --------------------------------------------------------------------------- #
def eca_reference(x, conv_w, fc1_w, fc1_b, fc2_w, fc2_b):
    B, C, H, W = x.shape
    p = x.astype(jnp.float32).mean(axis=(2, 3))                   # (B, C)
    w = conv_w.reshape(-1)
    k = w.shape[0]
    pad = (k - 1) // 2
    p_pad = jnp.pad(p, ((0, 0), (pad, pad)))
    yc = sum(w[j] * p_pad[:, j:j + C] for j in range(k))          # conv1d along C
    h = p @ fc1_w.reshape(-1, C).T + fc1_b
    ga = h @ fc2_w.reshape(C, -1).T + fc2_b
    return jax.nn.sigmoid(ga + yc).reshape(B, C, 1, 1).astype(x.dtype)


if __name__ == "__main__":
    B, C, H, W = 2, 8, 16, 16
    k_size = 3

    key = jax.random.PRNGKey(0)
    kx, kc, k1w, k1b, k2w, k2b = jax.random.split(key, 6)

    x = jax.random.normal(kx, (B, C, H, W), dtype=jnp.float32)
    # Deterministic synthetic parameters (shapes match the nn.Module's __init__).
    conv_w = jax.random.normal(kc, (1, 1, k_size), dtype=jnp.float32) * 0.5
    fc1_w = jax.random.normal(k1w, (C // 4, C, 1, 1), dtype=jnp.float32) * 0.3
    fc1_b = jax.random.normal(k1b, (C // 4,), dtype=jnp.float32) * 0.1
    fc2_w = jax.random.normal(k2w, (C, C // 4, 1, 1), dtype=jnp.float32) * 0.3
    fc2_b = jax.random.normal(k2b, (C,), dtype=jnp.float32) * 0.1

    out = eca_forward(x, conv_w, fc1_w, fc1_b, fc2_w, fc2_b)
    out = jax.block_until_ready(out)

    ref = eca_reference(x, conv_w, fc1_w, fc1_b, fc2_w, fc2_b)
    assert out.shape == (B, C, 1, 1)
    assert jnp.allclose(out, ref, atol=1e-5, rtol=1e-5), "mismatch vs reference"

    print("KERNEL_OK")
</pallas_src>

<mosaic_0001>
module attributes {stable_mosaic.version = 11 : i64} {
  func.func @_eca_kernel(%arg0: i32, %arg1: i32, %arg2: memref<3xf32, #tpu.memory_space<smem>>, %arg3: memref<1x8x256xf32, #tpu.memory_space<vmem>>, %arg4: memref<8x128xf32, #tpu.memory_space<vmem>>, %arg5: memref<1x128xf32, #tpu.memory_space<vmem>>, %arg6: memref<128x8xf32, #tpu.memory_space<vmem>>, %arg7: memref<1x8xf32, #tpu.memory_space<vmem>>, %arg8: memref<1x1x8xf32, #tpu.memory_space<vmem>>, %arg9: memref<1x8xf32, #tpu.memory_space<vmem>>) attributes {dimension_semantics = [#tpu.dimension_semantics<parallel>, #tpu.dimension_semantics<arbitrary>], iteration_bounds = array<i64: 2, 1>, scalar_prefetch = 0 : i64, scratch_operands = 1 : i64, tpu.core_type = #tpu.core_type<tc>, window_params = [{transform_indices = @transform_0, window_bounds = array<i64: 3>}, {transform_indices = @transform_1, window_bounds = array<i64: 1, 8, 256>}, {pipeline_mode = #tpu.pipeline_mode<synchronous>, transform_indices = @transform_2, window_bounds = array<i64: 8, 128>}, {pipeline_mode = #tpu.pipeline_mode<synchronous>, transform_indices = @transform_3, window_bounds = array<i64: 1, 128>}, {pipeline_mode = #tpu.pipeline_mode<synchronous>, transform_indices = @transform_4, window_bounds = array<i64: 128, 8>}, {pipeline_mode = #tpu.pipeline_mode<synchronous>, transform_indices = @transform_5, window_bounds = array<i64: 1, 8>}, {transform_indices = @transform_6, window_bounds = array<i64: 1, 1, 8>}]} {
    %c0_i32 = arith.constant 0 : i32
    %0 = arith.cmpi eq, %arg1, %c0_i32 : i32
    %1 = arith.extui %0 : i1 to i32
    %c0_i32_0 = arith.constant 0 : i32
    %2 = arith.cmpi ne, %1, %c0_i32_0 : i32
    scf.if %2 {
      %cst_9 = arith.constant 0.000000e+00 : f32
      %11 = vector.broadcast %cst_9 : f32 to vector<1x8xf32>
      %c0_10 = arith.constant 0 : index
      %c0_11 = arith.constant 0 : index
      %12 = vector.load %arg9[%c0_10, %c0_11] : memref<1x8xf32, #tpu.memory_space<vmem>>, vector<1x8xf32>
      tpu.vector_store %arg9[%c0_10, %c0_11], %11 {strides = array<i32>} : memref<1x8xf32, #tpu.memory_space<vmem>>, vector<1x8xf32>,
    } else {
    }
    %c0 = arith.constant 0 : index
    %c0_1 = arith.constant 0 : index
    %c0_2 = arith.constant 0 : index
    %3 = vector.load %arg3[%c0, %c0_1, %c0_2] : memref<1x8x256xf32, #tpu.memory_space<vmem>>, vector<1x8x256xf32>
    %c0_3 = arith.constant 0 : index
    %c0_4 = arith.constant 0 : index
    %4 = vector.load %arg9[%c0_3, %c0_4] : memref<1x8xf32, #tpu.memory_space<vmem>>, vector<1x8xf32>
    %cst = arith.constant dense<0.000000e+00> : vector<1x8xf32>
    %5 = vector.multi_reduction <add>, %3, %cst [2] : vector<1x8x256xf32> to vector<1x8xf32>
    %6 = arith.addf %4, %5 : vector<1x8xf32>
    %c0_5 = arith.constant 0 : index
    %c0_6 = arith.constant 0 : index
    %7 = vector.load %arg9[%c0_5, %c0_6] : memref<1x8xf32, #tpu.memory_space<vmem>>, vector<1x8xf32>
    tpu.vector_store %arg9[%c0_5, %c0_6], %6 {strides = array<i32>} : memref<1x8xf32, #tpu.memory_space<vmem>>, vector<1x8xf32>,
    %c0_i32_7 = arith.constant 0 : i32
    %8 = arith.cmpi eq, %arg1, %c0_i32_7 : i32
    %9 = arith.extui %8 : i1 to i32
    %c0_i32_8 = arith.constant 0 : i32
    %10 = arith.cmpi ne, %9, %c0_i32_8 : i32
    scf.if %10 {
      %c0_9 = arith.constant 0 : index
      %c0_10 = arith.constant 0 : index
      %11 = vector.load %arg9[%c0_9, %c0_10] : memref<1x8xf32, #tpu.memory_space<vmem>>, vector<1x8xf32>
      %cst_11 = arith.constant 3.906250e-03 : f32
      %12 = vector.broadcast %cst_11 : f32 to vector<1x8xf32>
      %13 = arith.mulf %11, %12 : vector<1x8xf32>
      %c0_12 = arith.constant 0 : index
      %c0_13 = arith.constant 0 : index
      %14 = vector.load %arg4[%c0_12, %c0_13] : memref<8x128xf32, #tpu.memory_space<vmem>>, vector<8x128xf32>
      %cst_14 = arith.constant dense<0.000000e+00> : vector<1x128xf32>
      %15 = tpu.matmul %13, %14, %cst_14 {dimension_numbers = #tpu.dot_dimension_numbers<[1], [0], [0], [1], [0, 0, 1, 1], [], []>} : vector<1x8xf32>, vector<8x128xf32>, vector<1x128xf32> -> vector<1x128xf32>
      %c0_15 = arith.constant 0 : index
      %c0_16 = arith.constant 0 : index
      %16 = vector.load %arg5[%c0_15, %c0_16] : memref<1x128xf32, #tpu.memory_space<vmem>>, vector<1x128xf32>
      %17 = arith.addf %15, %16 : vector<1x128xf32>
      %c0_17 = arith.constant 0 : index
      %c0_18 = arith.constant 0 : index
      %18 = vector.load %arg6[%c0_17, %c0_18] : memref<128x8xf32, #tpu.memory_space<vmem>>, vector<128x8xf32>
      %cst_19 = arith.constant dense<0.000000e+00> : vector<1x8xf32>
      %19 = tpu.matmul %17, %18, %cst_19 {dimension_numbers = #tpu.dot_dimension_numbers<[1], [0], [0], [1], [0, 0, 1, 1], [], []>} : vector<1x128xf32>, vector<128x8xf32>, vector<1x8xf32> -> vector<1x8xf32>
      %c0_20 = arith.constant 0 : index
      %c0_21 = arith.constant 0 : index
      %20 = vector.load %arg7[%c0_20, %c0_21] : memref<1x8xf32, #tpu.memory_space<vmem>>, vector<1x8xf32>
      %21 = arith.addf %19, %20 : vector<1x8xf32>
      %22 = tpu.iota {dimensions = array<i32: 0>} : vector<8x8xi32>
      %23 = tpu.iota {dimensions = array<i32: 1>} : vector<8x8xi32>
      %cst_22 = arith.constant 0.000000e+00 : f32
      %24 = vector.broadcast %cst_22 : f32 to vector<8x8xf32>
      %c0_i32_23 = arith.constant 0 : i32
      %25 = vector.broadcast %c0_i32_23 : i32 to vector<8x8xi32>
      %26 = arith.addi %23, %25 : vector<8x8xi32>
      %27 = arith.subi %22, %26 : vector<8x8xi32>
      %c-1_i32 = arith.constant -1 : i32
      %28 = vector.broadcast %c-1_i32 : i32 to vector<8x8xi32>
      %29 = arith.cmpi eq, %27, %28 : vector<8x8xi32>
      %c0_24 = arith.constant 0 : index
      %30 = memref.load %arg2[%c0_24] : memref<3xf32, #tpu.memory_space<smem>>
      %31 = vector.broadcast %30 : f32 to vector<8x8xf32>
      %32 = arith.select %29, %31, %24 : vector<8x8xi1>, vector<8x8xf32>
      %c0_i32_25 = arith.constant 0 : i32
      %33 = vector.broadcast %c0_i32_25 : i32 to vector<8x8xi32>
      %34 = arith.addi %23, %33 : vector<8x8xi32>
      %35 = arith.subi %22, %34 : vector<8x8xi32>
      %c0_i32_26 = arith.constant 0 : i32
      %36 = vector.broadcast %c0_i32_26 : i32 to vector<8x8xi32>
      %37 = arith.cmpi eq, %35, %36 : vector<8x8xi32>
      %c1 = arith.constant 1 : index
      %38 = memref.load %arg2[%c1] : memref<3xf32, #tpu.memory_space<smem>>
      %39 = vector.broadcast %38 : f32 to vector<8x8xf32>
      %40 = arith.select %37, %39, %32 : vector<8x8xi1>, vector<8x8xf32>
      %c0_i32_27 = arith.constant 0 : i32
      %41 = vector.broadcast %c0_i32_27 : i32 to vector<8x8xi32>
      %42 = arith.addi %23, %41 : vector<8x8xi32>
      %43 = arith.subi %22, %42 : vector<8x8xi32>
      %c1_i32 = arith.constant 1 : i32
      %44 = vector.broadcast %c1_i32 : i32 to vector<8x8xi32>
      %45 = arith.cmpi eq, %43, %44 : vector<8x8xi32>
      %c2 = arith.constant 2 : index
      %46 = memref.load %arg2[%c2] : memref<3xf32, #tpu.memory_space<smem>>
      %47 = vector.broadcast %46 : f32 to vector<8x8xf32>
      %48 = arith.select %45, %47, %40 : vector<8x8xi1>, vector<8x8xf32>
      %cst_28 = arith.constant dense<0.000000e+00> : vector<1x8xf32>
      %49 = tpu.matmul %13, %48, %cst_28 {dimension_numbers = #tpu.dot_dimension_numbers<[1], [0], [0], [1], [0, 0, 1, 1], [], []>} : vector<1x8xf32>, vector<8x8xf32>, vector<1x8xf32> -> vector<1x8xf32>
      %50 = arith.addf %21, %49 : vector<1x8xf32>
      %51 = arith.negf %50 : vector<1x8xf32>
      %52 = math.exp %51 : vector<1x8xf32>
      %cst_29 = arith.constant 1.000000e+00 : f32
      %53 = vector.broadcast %cst_29 : f32 to vector<1x8xf32>
      %54 = arith.addf %53, %52 : vector<1x8xf32>
      %55 = arith.divf %53, %54 : vector<1x8xf32>
      %56 = vector.shape_cast %55 : vector<1x8xf32> to vector<1x1x8xf32>
      %c0_30 = arith.constant 0 : index
      %c0_31 = arith.constant 0 : index
      %c0_32 = arith.constant 0 : index
      %57 = vector.load %arg8[%c0_30, %c0_31, %c0_32] : memref<1x1x8xf32, #tpu.memory_space<vmem>>, vector<1x1x8xf32>
      tpu.vector_store %arg8[%c0_30, %c0_31, %c0_32], %56 {strides = array<i32>} : memref<1x1x8xf32, #tpu.memory_space<vmem>>, vector<1x1x8xf32>,
    } else {
    }
    return
  }
  func.func @transform_0(%arg0: i32, %arg1: i32) -> i32 {
    %c0_i32 = arith.constant 0 : i32
    %c0_i32_0 = arith.constant 0 : i32
    return %c0_i32 : i32
  }
  func.func @transform_1(%arg0: i32, %arg1: i32) -> (i32, i32, i32) {
    %c0_i32 = arith.constant 0 : i32
    %c0_i32_0 = arith.constant 0 : i32
    return %arg0, %c0_i32, %arg1 : i32, i32, i32
  }
  func.func @transform_2(%arg0: i32, %arg1: i32) -> (i32, i32) {
    %c0_i32 = arith.constant 0 : i32
    %c0_i32_0 = arith.constant 0 : i32
    %c0_i32_1 = arith.constant 0 : i32
    return %c0_i32, %c0_i32_0 : i32, i32
  }
  func.func @transform_3(%arg0: i32, %arg1: i32) -> (i32, i32) {
    %c0_i32 = arith.constant 0 : i32
    %c0_i32_0 = arith.constant 0 : i32
    %c0_i32_1 = arith.constant 0 : i32
    return %c0_i32, %c0_i32_0 : i32, i32
  }
  func.func @transform_4(%arg0: i32, %arg1: i32) -> (i32, i32) {
    %c0_i32 = arith.constant 0 : i32
    %c0_i32_0 = arith.constant 0 : i32
    %c0_i32_1 = arith.constant 0 : i32
    return %c0_i32, %c0_i32_0 : i32, i32
  }
  func.func @transform_5(%arg0: i32, %arg1: i32) -> (i32, i32) {
    %c0_i32 = arith.constant 0 : i32
    %c0_i32_0 = arith.constant 0 : i32
    %c0_i32_1 = arith.constant 0 : i32
    return %c0_i32, %c0_i32_0 : i32, i32
  }
  func.func @transform_6(%arg0: i32, %arg1: i32) -> (i32, i32, i32) {
    %c0_i32 = arith.constant 0 : i32
    %c0_i32_0 = arith.constant 0 : i32
    %c0_i32_1 = arith.constant 0 : i32
    return %arg0, %c0_i32, %c0_i32_0 : i32, i32, i32
  }
}

</mosaic_0001>

<llo_original>
// kernel: _eca_forward.1
$region0: #{_eca_forward.1}
  #allocation0 [shape = 'u32[]', space=smem, size = 0x4, offset = 0x4, fixed_abs, tag = 'smem constant byte address 0x4 - core index']
  #allocation1 [shape = 'u32[144,128]{1,0:T(1,128)}', space=vmem, size = 0x12000, scoped, tag = 'internal scratch']
  #allocation2 [shape = 'f32[1,8]{1,0:T(1,128)}', space=vmem, size = 0x200, scoped, tag = 'scratch operand']
  %s0 = inlined_call_operand.vmem [shape: f32[3], index: 0, kind: input, shape index: {}]
  %s1 = inlined_call_operand.vmem [shape: f32[2,8,256], index: 1, kind: input, shape index: {}]
  %s2 = inlined_call_operand.vmem [shape: f32[8,128], index: 2, kind: input, shape index: {}]
  %s3 = inlined_call_operand.vmem [shape: f32[1,128], index: 3, kind: input, shape index: {}]
  %s4 = inlined_call_operand.vmem [shape: f32[128,8], index: 4, kind: input, shape index: {}]
  %s5 = inlined_call_operand.vmem [shape: f32[1,8], index: 5, kind: input, shape index: {}]
  %s6 = inlined_call_operand.hbm [shape: f32[2,1,8], index: 6, kind: output, shape index: {}]
  %s7 = sld [smem:[#allocation0]]
  $region69: #{_eca_forward.1} parent=0
    _
  %s9 = ssub.s32 1, %s7
  %s10 = scalar_select 0, %s9, %s7
  $region1: #{_eca_forward.1} parent=0
    #allocation3 [shape = 'u8[512]{0}', space=smem, size = 0x200, scoped, tag = 'input window, operand 0, single buffered']
    #allocation4 [shape = 's32[2]{0}', space=sflag, size = 0x8, scoped, tag = 'scoped memory for _eca_forward.1']
    #allocation5 [shape = 's32[2]{0}', space=sflag, size = 0x8, scoped, tag = 'scoped memory for _eca_forward.1']
    #allocation6 [shape = 'u8[1024]{0}', space=vmem, size = 0x400, scoped, tag = 'output window, operand 0']
    %11 = vsyncpa [#allocation5], 0
    %12 = vsyncpa [#allocation4], 0
    %s13 = scalar_lea.sflag [#allocation4], 1
    %14 = vsyncpa %s13, 0
    loop: start=0, step=1, limit=4
    $region2: #{_eca_forward.1} parent=1 // loop_pre_header
      _
    $region3: #{_eca_forward.1} parent=1 // loop_header
      %s16 = sphi 0, %s20
      %p17 = scmp.ge.s32.totalorder %s16, 4
      %s23 = sphi 0, %s35
      %s24 = sphi 0, %s31
      %s25 = sphi 0, %s23
      %s26 = sphi 0, %s24
      %s27 = sphi 0, %s25
      %s28 = sphi 0, %s26
      %s36 = sphi 0, %s36
      %s38 = sphi 0, %s36
      %s39 = sphi 0, %s38
      %s53 = sphi 0, %s39
      %s61 = sphi 0, %s63
      %s64 = sphi 0, %s61
      %s65 = sphi 0, %s64
      %s81 = sphi 0, %s65
      %s85 = sphi 0, %s85
      %s87 = sphi 0, %s85
      %s88 = sphi 0, %s87
      %s102 = sphi 0, %s88
      %s106 = sphi 0, %s106
      %s108 = sphi 0, %s106
      %s109 = sphi 0, %s108
      %s123 = sphi 0, %s109
      %s127 = sphi 0, %s127
      %s129 = sphi 0, %s127
      %s130 = sphi 0, %s129
      %s144 = sphi 0, %s130
      %s148 = sphi 0, %s148
      %s150 = sphi 0, %s148
      %s151 = sphi 0, %s150
      %s165 = sphi 0, %s151
      %s171 = sphi 0, %s173
      %s174 = sphi 0, %s171
      %s175 = sphi 0, %s174
      %s191 = sphi 0, %s175
    $region4: #{_eca_forward.1} parent=1 // loop_header_branch
      %19 = sbr.rel (%p17) target = $region8
    $region5: #{_eca_forward.1} parent=1 // loop_body
      %s21 = ssub.s32 %s16, 1
      %s22 = ssub.s32 %s16, 2
      %s29 = sadd.s32 1, %s24
      %p30 = scmp.ge.s32.totalorder %s29, 1
      %s31 = scalar_select %p30, 0, %s29
      %s32 = sadd.s32 1, %s23
      %s33 = scalar_select %p30, %s32, %s23
      %p34 = scmp.ge.s32.totalorder %s33, 2
      %s35 = scalar_select %p34, 0, %s33
      %s37 = sadd.s32 %s36, 1
      %p40 = scmp.eq.s32.totalorder %s16, 1
      %p41 = scmp.ne.s32.totalorder %s36, %s38
      %p42 = scmp.eq.s32.totalorder %s16, 0
      %p43 = por %p41, %p42
      %p44 = scmp.ne.s32.totalorder %s36, %s38
      %p45 = scmp.eq.s32.totalorder %s21, 1
      %p46 = por %p44, %p45
      %p47 = scmp.ne.s32.totalorder %s38, %s39
      %p48 = scmp.eq.s32.totalorder %s21, 0
      %p49 = por %p47, %p48
      %p50 = scmp.ne.s32.totalorder %s38, %s39
      %p51 = scmp.eq.s32.totalorder %s22, 1
      %p52 = por %p50, %p51
      %p54 = scmp.ne.s32.totalorder %s39, %s53
      %p55 = scmp.eq.s32.totalorder %s22, 0
      %p56 = por %p54, %p55
      %s57 = ssub.s32 %s23, %s35
      %s58 = ssub.s32 %s24, %s31
      %s59 = sor.u32 %s57, %s58
      %p60 = scmp.eq.s32.totalorder %s59, 0
      %s62 = sadd.s32 %s61, 1
      %s63 = scalar_select %p60, %s61, %s62
      %p66 = pneg %p60
      %p67 = scmp.eq.s32.totalorder %s16, 1
      %p68 = por %p66, %p67
      %p69 = scmp.ne.s32.totalorder %s61, %s64
      %p70 = scmp.eq.s32.totalorder %s16, 0
      %p71 = por %p69, %p70
      %p72 = scmp.ne.s32.totalorder %s61, %s64
      %p73 = scmp.eq.s32.totalorder %s21, 1
      %p74 = por %p72, %p73
      %p75 = scmp.ne.s32.totalorder %s64, %s65
      %p76 = scmp.eq.s32.totalorder %s21, 0
      %p77 = por %p75, %p76
      %p78 = scmp.ne.s32.totalorder %s64, %s65
      %p79 = scmp.eq.s32.totalorder %s22, 1
      %p80 = por %p78, %p79
      %p82 = scmp.ne.s32.totalorder %s65, %s81
      %p83 = scmp.eq.s32.totalorder %s22, 0
      %p84 = por %p82, %p83
      %s86 = sadd.s32 %s85, 1
      %p89 = scmp.eq.s32.totalorder %s16, 1
      %p90 = scmp.ne.s32.totalorder %s85, %s87
      %p91 = scmp.eq.s32.totalorder %s16, 0
      %p92 = por %p90, %p91
      %p93 = scmp.ne.s32.totalorder %s85, %s87
      %p94 = scmp.eq.s32.totalorder %s21, 1
      %p95 = por %p93, %p94
      %p96 = scmp.ne.s32.totalorder %s87, %s88
      %p97 = scmp.eq.s32.totalorder %s21, 0
      %p98 = por %p96, %p97
      %p99 = scmp.ne.s32.totalorder %s87, %s88
      %p100 = scmp.eq.s32.totalorder %s22, 1
      %p101 = por %p99, %p100
      %p103 = scmp.ne.s32.totalorder %s88, %s102
      %p104 = scmp.eq.s32.totalorder %s22, 0
      %p105 = por %p103, %p104
      %s107 = sadd.s32 %s106, 1
      %p110 = scmp.eq.s32.totalorder %s16, 1
      %p111 = scmp.ne.s32.totalorder %s106, %s108
      %p112 = scmp.eq.s32.totalorder %s16, 0
      %p113 = por %p111, %p112
      %p114 = scmp.ne.s32.totalorder %s106, %s108
      %p115 = scmp.eq.s32.totalorder %s21, 1
      %p116 = por %p114, %p115
      %p117 = scmp.ne.s32.totalorder %s108, %s109
      %p118 = scmp.eq.s32.totalorder %s21, 0
      %p119 = por %p117, %p118
      %p120 = scmp.ne.s32.totalorder %s108, %s109
      %p121 = scmp.eq.s32.totalorder %s22, 1
      %p122 = por %p120, %p121
      %p124 = scmp.ne.s32.totalorder %s109, %s123
      %p125 = scmp.eq.s32.totalorder %s22, 0
      %p126 = por %p124, %p125
      %s128 = sadd.s32 %s127, 1
      %p131 = scmp.eq.s32.totalorder %s16, 1
      %p132 = scmp.ne.s32.totalorder %s127, %s129
      %p133 = scmp.eq.s32.totalorder %s16, 0
      %p134 = por %p132, %p133
      %p135 = scmp.ne.s32.totalorder %s127, %s129
      %p136 = scmp.eq.s32.totalorder %s21, 1
      %p137 = por %p135, %p136
      %p138 = scmp.ne.s32.totalorder %s129, %s130
      %p139 = scmp.eq.s32.totalorder %s21, 0
      %p140 = por %p138, %p139
      %p141 = scmp.ne.s32.totalorder %s129, %s130
      %p142 = scmp.eq.s32.totalorder %s22, 1
      %p143 = por %p141, %p142
      %p145 = scmp.ne.s32.totalorder %s130, %s144
      %p146 = scmp.eq.s32.totalorder %s22, 0
      %p147 = por %p145, %p146
      %s149 = sadd.s32 %s148, 1
      %p152 = scmp.eq.s32.totalorder %s16, 1
      %p153 = scmp.ne.s32.totalorder %s148, %s150
      %p154 = scmp.eq.s32.totalorder %s16, 0
      %p155 = por %p153, %p154
      %p156 = scmp.ne.s32.totalorder %s148, %s150
      %p157 = scmp.eq.s32.totalorder %s21, 1
      %p158 = por %p156, %p157
      %p159 = scmp.ne.s32.totalorder %s150, %s151
      %p160 = scmp.eq.s32.totalorder %s21, 0
      %p161 = por %p159, %p160
      %p162 = scmp.ne.s32.totalorder %s150, %s151
      %p163 = scmp.eq.s32.totalorder %s22, 1
      %p164 = por %p162, %p163
      %p166 = scmp.ne.s32.totalorder %s151, %s165
      %p167 = scmp.eq.s32.totalorder %s22, 0
      %p168 = por %p166, %p167
      %s169 = ssub.s32 %s23, %s35
      %p170 = scmp.eq.s32.totalorder %s169, 0
      %s172 = sadd.s32 %s171, 1
      %s173 = scalar_select %p170, %s171, %s172
      %p176 = pneg %p170
      %p177 = scmp.eq.s32.totalorder %s16, 1
      %p178 = por %p176, %p177
      %p179 = scmp.ne.s32.totalorder %s171, %s174
      %p180 = scmp.eq.s32.totalorder %s16, 0
      %p181 = por %p179, %p180
      %p182 = scmp.ne.s32.totalorder %s171, %s174
      %p183 = scmp.eq.s32.totalorder %s21, 1
      %p184 = por %p182, %p183
      %p185 = scmp.ne.s32.totalorder %s174, %s175
      %p186 = scmp.eq.s32.totalorder %s21, 0
      %p187 = por %p185, %p186
      %p188 = scmp.ne.s32.totalorder %s174, %s175
      %p189 = scmp.eq.s32.totalorder %s22, 1
      %p190 = por %p188, %p189
      %p192 = scmp.ne.s32.totalorder %s175, %s191
      %p193 = scmp.eq.s32.totalorder %s22, 0
      %p194 = por %p192, %p193
      %p195 = scmp.le.s32.totalorder 1, %s16
      %p196 = scmp.lt.s32.totalorder %s16, 3
      %p197 = pnand %p195, %p196
      %p198 = pneg %p197
      // Predicated region
      $region9: #{_eca_forward.1} parent=5 // pred_check
        _
      $region10: #{_eca_forward.1} parent=5 // pred_check_branch
        %200 = sbr.rel (%p197) target = $region12
      $region11: #{_eca_forward.1} parent=5 // pred_region
        %s201 = ssub.s32 %s16, 1
        // Predicated region
        $region13: #{_eca_forward.1} parent=11 // pred_check
          %p202 = pneg %p49
        $region14: #{_eca_forward.1} parent=11 // pred_check_branch
          %204 = sbr.rel (%p202) target = $region16
        $region15: #{_eca_forward.1} parent=11 // pred_region
          %s206 = ssub.s32 16, 16
          %207 = vsyncadd [#allocation5], %s206
          %s209 = sshll.u32 %s0, 4
          %s210 = int_to_ptr.vmem [resolvable:$true] %s209
          %212 = dma.vmem_to_smem %s210, 16, [#allocation3], [#allocation5]
        $region16: #{_eca_forward.1} parent=11 // pred_fallthru
          _
        // Predicated region
        $region17: #{_eca_forward.1} parent=11 // pred_check
          %p213 = pneg %p98
        $region18: #{_eca_forward.1} parent=11 // pred_check_branch
          %215 = sbr.rel (%p213) target = $region20
        $region19: #{_eca_forward.1} parent=11 // pred_region
          _
        $region20: #{_eca_forward.1} parent=11 // pred_fallthru
          _
        // Predicated region
        $region21: #{_eca_forward.1} parent=11 // pred_check
          %p216 = pneg %p119
        $region22: #{_eca_forward.1} parent=11 // pred_check_branch
          %218 = sbr.rel (%p216) target = $region24
        $region23: #{_eca_forward.1} parent=11 // pred_region
          _
        $region24: #{_eca_forward.1} parent=11 // pred_fallthru
          _
        // Predicated region
        $region25: #{_eca_forward.1} parent=11 // pred_check
          %p219 = pneg %p140
        $region26: #{_eca_forward.1} parent=11 // pred_check_branch
          %221 = sbr.rel (%p219) target = $region28
        $region27: #{_eca_forward.1} parent=11 // pred_region
          _
        $region28: #{_eca_forward.1} parent=11 // pred_fallthru
          _
        // Predicated region
        $region29: #{_eca_forward.1} parent=11 // pred_check
          %p222 = pneg %p161
        $region30: #{_eca_forward.1} parent=11 // pred_check_branch
          %224 = sbr.rel (%p222) target = $region32
        $region31: #{_eca_forward.1} parent=11 // pred_region
          _
        $region32: #{_eca_forward.1} parent=11 // pred_fallthru
          _
      $region12: #{_eca_forward.1} parent=5 // pred_fallthru
        _
      %p225 = scmp.lt.s32.totalorder %s16, 2
      // Predicated region
      $region33: #{_eca_forward.1} parent=5 // pred_check
        %p226 = pneg %p225
      $region34: #{_eca_forward.1} parent=5 // pred_check_branch
        %228 = sbr.rel (%p226) target = $region36
      $region35: #{_eca_forward.1} parent=5 // pred_region
        // Predicated region
        $region37: #{_eca_forward.1} parent=35 // pred_check
          %p229 = pneg %p71
        $region38: #{_eca_forward.1} parent=35 // pred_check_branch
          %231 = sbr.rel (%p229) target = $region40
        $region39: #{_eca_forward.1} parent=35 // pred_region
          %s232 = smul.u32 2, %s24
          %p233 = scmp.lt.s32.totalorder %s23, 1
          %s234 = scalar_select %p233, %s23, 1
          %p235 = scmp.lt.s32.totalorder %s232, 1
          %s236 = scalar_select %p235, %s232, 1
          %s237 = smul.addr %s234, 2
          %s238 = sadd.s32 %s236, %s237
          %s239 = smul.addr %s238, 8
          %s240 = scalar_lea.vmem %s1, %s239
          %s241 = smul.u32 2, %s24
        $region40: #{_eca_forward.1} parent=35 // pred_fallthru
          _
      $region36: #{_eca_forward.1} parent=5 // pred_fallthru
        _
      %p242 = scmp.le.s32.totalorder 1, %s16
      %p243 = scmp.lt.s32.totalorder %s16, 3
      %p244 = pnand %p242, %p243
      %p245 = pneg %p244
      // Predicated region
      $region41: #{_eca_forward.1} parent=5 // pred_check
        _
      $region42: #{_eca_forward.1} parent=5 // pred_check_branch
        %247 = sbr.rel (%p244) target = $region44
      $region43: #{_eca_forward.1} parent=5 // pred_region
        %s248 = ssub.s32 %s16, 1
        // Predicated region
        $region45: #{_eca_forward.1} parent=43 // pred_check
          %p249 = pneg %p49
        $region46: #{_eca_forward.1} parent=43 // pred_check_branch
          %251 = sbr.rel (%p249) target = $region48
        $region47: #{_eca_forward.1} parent=43 // pred_region
          %252 = dma.done [#allocation5], 16
        $region48: #{_eca_forward.1} parent=43 // pred_fallthru
          _
        %253 = sfence
        %p254 = pneg %p49
        %p255 = pneg %p46
        %s256 = smul.u32 2, %s26
        %p257 = scmp.lt.s32.totalorder %s25, 1
        %s258 = scalar_select %p257, %s25, 1
        %p259 = scmp.lt.s32.totalorder %s256, 1
        %s260 = scalar_select %p259, %s256, 1
        %s261 = smul.addr %s258, 2
        %s262 = sadd.s32 %s260, %s261
        %s263 = smul.addr %s262, 8
        %s264 = scalar_lea.vmem %s1, %s263
        %p265 = pneg %p77
        %p266 = pneg %p74
        %p267 = pneg %p98
        %p268 = pneg %p95
        %p269 = pneg %p119
        %p270 = pneg %p116
        %p271 = pneg %p140
        %p272 = pneg %p137
        %p273 = pneg %p161
        %p274 = pneg %p158
        %p275 = pneg %p187
        %p276 = pneg %p184
        %s277 = sand.u32 %s174, 1
        %s278 = scalar_lea.sflag [#allocation4], %s277
        %s279 = sand.u32 %s174, 1
        %s280 = scalar_lea.vmem [#allocation6], %s279
        %s281 = smul.u32 2, %s26
        %p282 = scmp.lt.s32.totalorder %s25, 1
        %s283 = scalar_select %p282, %s25, 1
        %p284 = scmp.lt.s32.totalorder %s281, 1
        %s285 = scalar_select %p284, %s281, 1
        %s286 = smul.addr %s283, 2
        %s287 = sadd.s32 %s285, %s286
        %s288 = smul.addr %s287, 8
        %s289 = scalar_lea.vmem %s1, %s288
        %s290 = smul.u32 2, %s26
        %p291 = scmp.eq.s32.totalorder %s26, 0
        // Predicated region
        $region49: #{_eca_forward.1} parent=43 // pred_check
          %p292 = pneg %p291
        $region50: #{_eca_forward.1} parent=43 // pred_check_branch
          %294 = sbr.rel (%p292) target = $region52
        $region51: #{_eca_forward.1} parent=43 // pred_region
          %vm295 = vcmask 57344
          %296 = vst.msk [vmem:[#allocation2] sm:$0x1] %vm295, 0.0
        $region52: #{_eca_forward.1} parent=43 // pred_fallthru
          _
        %v297 = vld [vmem:[%s289] sm:$0xff]
        %v298 = vld [vmem:[%s289 + $0x8] sm:$0xff]
        %v299 = vld [vmem:[#allocation2] sm:$0x1]
        %v300 = vadd.f32 %v297, %v298
        %301 = vadd.xlane.f32.xlu0 %v300
        %v302 = vpop.xlane.xlu0 %301
        %v304 = vlaneseq
        %v305 = vshrl.u32 %v304, 7
        %v306 = vsub.s32 0, %v305
        %v307 = vrot.slane %v302, %v306
        %v308 = vlaneseq
        %v309 = vshrl.u32 %v308, 7
        %v310 = vsub.s32 1, %v309
        %v311 = vrot.slane %v302, %v310
        %v312 = vlaneseq
        %v313 = vshrl.u32 %v312, 7
        %v314 = vsub.s32 2, %v313
        %v315 = vrot.slane %v302, %v314
        %v316 = vlaneseq
        %v317 = vshrl.u32 %v316, 7
        %v318 = vsub.s32 3, %v317
        %v319 = vrot.slane %v302, %v318
        %v320 = vlaneseq
        %v321 = vshrl.u32 %v320, 7
        %v322 = vsub.s32 4, %v321
        %v323 = vrot.slane %v302, %v322
        %v324 = vlaneseq
        %v325 = vshrl.u32 %v324, 7
        %v326 = vsub.s32 5, %v325
        %v327 = vrot.slane %v302, %v326
        %v328 = vlaneseq
        %v329 = vshrl.u32 %v328, 7
        %v330 = vsub.s32 6, %v329
        %v331 = vrot.slane %v302, %v330
        %v332 = vlaneseq
        %v333 = vshrl.u32 %v332, 7
        %v334 = vsub.s32 7, %v333
        %v335 = vrot.slane %v302, %v334
        %v336 = vcombine.low %v307, %v311
        %v337 = vcombine.low %v315, %v319
        %v338 = vcombine.low %v323, %v327
        %v339 = vcombine.low %v331, %v335
        %v341 = vunpack.c.l.s4 1966171168
        %v342 = vunpack.c.0.s8 %v341
        %v343 = vlaneseq
        %v344 = vshrl.u32 %v343, 7
        %v345 = vsub.s32 %v342, %v344
        %v346 = vrot.slane %v336, %v345
        %v348 = vunpack.c.l.s4 1966171168
        %v349 = vunpack.c.0.s8 %v348
        %v350 = vlaneseq
        %v351 = vshrl.u32 %v350, 7
        %v352 = vsub.s32 %v349, %v351
        %v353 = vrot.slane %v337, %v352
        %v355 = vunpack.c.l.s4 1966171168
        %v356 = vunpack.c.0.s8 %v355
        %v357 = vlaneseq
        %v358 = vshrl.u32 %v357, 7
        %v359 = vsub.s32 %v356, %v358
        %v360 = vrot.slane %v338, %v359
        %v362 = vunpack.c.l.s4 1966171168
        %v363 = vunpack.c.0.s8 %v362
        %v364 = vlaneseq
        %v365 = vshrl.u32 %v364, 7
        %v366 = vsub.s32 %v363, %v365
        %v367 = vrot.slane %v339, %v366
        %v368 = vcombine.low %v346, %v353
        %v369 = vcombine.low %v360, %v367
        %v371 = vunpack.c.l.s4 1966171168
        %v372 = vunpack.c.0.s8 %v371
        %v373 = vlaneseq
        %v374 = vshrl.u32 %v373, 7
        %v375 = vsub.s32 %v372, %v374
        %v376 = vrot.slane %v368, %v375
        %v378 = vunpack.c.l.s4 1966171168
        %v379 = vunpack.c.0.s8 %v378
        %v380 = vlaneseq
        %v381 = vshrl.u32 %v380, 7
        %v382 = vsub.s32 %v379, %v381
        %v383 = vrot.slane %v369, %v382
        %v384 = vcombine.low %v376, %v383
        %385 = vset.pattern.permute.xlu0 0
        %386 = vperm.xlu0 %385, %v384
        %v387 = vpop.permute.xlu0 %386
        %v388 = vlaneseq
        %v389 = vand.u32 %v388, 127
        %v390 = vlaneseq
        %v391 = vshrl.u32 %v390, 7
        %v392 = vsub.s32 %v389, %v391
        %v393 = vrot.slane %v387, %v392
        %v395 = vunpack.c.l.s4 1966171168
        %v396 = vunpack.c.0.s8 %v395
        %v397 = vlaneseq
        %v398 = vshrl.u32 %v397, 7
        %v399 = vsub.s32 %v396, %v398
        %v400 = vrot.slane %v393, %v399
        %v402 = vunpack.c.l.s4 1966171168
        %v403 = vunpack.c.0.s8 %v402
        %v404 = vlaneseq
        %v405 = vshrl.u32 %v404, 7
        %v406 = vsub.s32 %v403, %v405
        %v407 = vrot.slane %v400, %v406
        %v409 = vadd.f32 %v299, %v407
        %vm410 = vcmask 57344
        %411 = vst.msk [vmem:[#allocation2] sm:$0x1] %vm410, %v409
        // Predicated region
        $region53: #{_eca_forward.1} parent=43 // pred_check
          %p412 = pneg %p291
        $region54: #{_eca_forward.1} parent=43 // pred_check_branch
          %414 = sbr.rel (%p412) target = $region56
        $region55: #{_eca_forward.1} parent=43 // pred_region
          %v415 = vld [vmem:[#allocation2] sm:$0x1]
          %v416 = vmul.f32 %v415, 0.00390625
          %v417 = vld [vmem:[%s2] sm:$0xff]
          %v418 = vld [vmem:[%s3] sm:$0x1]
          %vm419 = vcmask 64512
          %v421 = vsel %vm419, %v416, 0
          %423 = vmatprep.subr.mxu0 0.0
          %424 = vmatpush1.msra.mxu0 %v417
          %425 = vmatprep.subr.mxu0 0.0
          %426 = vmatpush1.msra.mxu0 0.0
          %427 = vmatprep.subr.mxu0 0.0
          %428 = vmatpush1.msra.mxu0 0.0
          %429 = vmatprep.subr.mxu0 0.0
          %430 = vmatpush1.msra.mxu0 0.0
          %431 = vmatprep.subr.mxu0 0.0
          %432 = vmatpush1.msra.mxu0 0.0
          %433 = vmatprep.subr.mxu0 0.0
          %434 = vmatpush1.msra.mxu0 0.0
          %435 = vmatprep.subr.mxu0 0.0
          %436 = vmatpush1.msra.mxu0 0.0
          %437 = vmatprep.subr.mxu0 0.0
          %438 = vmatpush1.msra.mxu0 0.0
          %439 = vmatprep.subr.mxu0 0.0
          %440 = vmatpush1.msra.mxu0 0.0
          %441 = vmatprep.subr.mxu0 0.0
          %442 = vmatpush1.msra.mxu0 0.0
          %443 = vmatprep.subr.mxu0 0.0
          %444 = vmatpush1.msra.mxu0 0.0
          %445 = vmatprep.subr.mxu0 0.0
          %446 = vmatpush1.msra.mxu0 0.0
          %447 = vmatprep.subr.mxu0 0.0
          %448 = vmatpush1.msra.mxu0 0.0
          %449 = vmatprep.subr.mxu0 0.0
          %450 = vmatpush1.msra.mxu0 0.0
          %451 = vmatprep.subr.mxu0 0.0
          %452 = vmatpush1.msra.mxu0 0.0
          %453 = vmatprep.subr.mxu0 0.0
          %454 = vmatpush1.msra.mxu0 0.0
          %455 = vmatprep.subr.mxu0 0.0
          %456 = vmatpush1.msra.mxu0 0.0
          %457 = vmatprep.subr.mxu0 0.0
          %458 = vmatpush1.msra.mxu0 0.0
          %459 = vmatprep.subr.mxu0 0.0
          %460 = vmatpush1.msra.mxu0 0.0
          %461 = vmatprep.subr.mxu0 0.0
          %462 = vmatpush1.msra.mxu0 0.0
          %463 = vmatprep.subr.mxu0 0.0
          %464 = vmatpush1.msra.mxu0 0.0
          %465 = vmatprep.subr.mxu0 0.0
          %466 = vmatpush1.msra.mxu0 0.0
          %467 = vmatprep.subr.mxu0 0.0
          %468 = vmatpush1.msra.mxu0 0.0
          %469 = vmatprep.subr.mxu0 0.0
          %470 = vmatpush1.msra.mxu0 0.0
          %471 = vmatprep.subr.mxu0 0.0
          %472 = vmatpush1.msra.mxu0 0.0
          %473 = vmatprep.subr.mxu0 0.0
          %474 = vmatpush1.msra.mxu0 0.0
          %475 = vmatprep.subr.mxu0 0.0
          %476 = vmatpush1.msra.mxu0 0.0
          %477 = vmatprep.subr.mxu0 0.0
          %478 = vmatpush1.msra.mxu0 0.0
          %479 = vmatprep.subr.mxu0 0.0
          %480 = vmatpush1.msra.mxu0 0.0
          %481 = vmatprep.subr.mxu0 0.0
          %482 = vmatpush1.msra.mxu0 0.0
          %483 = vmatprep.subr.mxu0 0.0
          %484 = vmatpush1.msra.mxu0 0.0
          %485 = vmatprep.subr.mxu0 0.0
          %486 = vmatpush1.msra.mxu0 0.0
          %487 = vmatprep.mubr.f32.mxu0 0.0
          %488 = vmatmul.mubr.f32.gmra.mrb[0].mxu0 %v421
          %v489 = vpop.f32.mrb[0].mxu0
          %v490 = vadd.f32 %v418, %v489
          %v491 = vpop.f32.mrb[0].mxu0
          %492 = vdwg.mxu0
          %v493 = vld [vmem:[%s4] sm:$0xff]
          %v494 = vld [vmem:[%s4 + $0x8] sm:$0xff]
          %v495 = vld [vmem:[%s4 + $0x10] sm:$0xff]
          %v496 = vld [vmem:[%s4 + $0x18] sm:$0xff]
          %v497 = vld [vmem:[%s4 + $0x20] sm:$0xff]
          %v498 = vld [vmem:[%s4 + $0x28] sm:$0xff]
          %v499 = vld [vmem:[%s4 + $0x30] sm:$0xff]
          %v500 = vld [vmem:[%s4 + $0x38] sm:$0xff]
          %v501 = vld [vmem:[%s4 + $0x40] sm:$0xff]
          %v502 = vld [vmem:[%s4 + $0x48] sm:$0xff]
          %v503 = vld [vmem:[%s4 + $0x50] sm:$0xff]
          %v504 = vld [vmem:[%s4 + $0x58] sm:$0xff]
          %v505 = vld [vmem:[%s4 + $0x60] sm:$0xff]
          %v506 = vld [vmem:[%s4 + $0x68] sm:$0xff]
          %v507 = vld [vmem:[%s4 + $0x70] sm:$0xff]
          %v508 = vld [vmem:[%s4 + $0x78] sm:$0xff]
          %v509 = vld [vmem:[%s5] sm:$0x1]
          %510 = vmatprep.subr.mxu0 0.0
          %511 = vmatpush1.msra.mxu0 %v493
          %512 = vmatprep.subr.mxu0 0.0
          %513 = vmatpush1.msra.mxu0 %v494
          %514 = vmatprep.subr.mxu0 0.0
          %515 = vmatpush1.msra.mxu0 %v495
          %516 = vmatprep.subr.mxu0 0.0
          %517 = vmatpush1.msra.mxu0 %v496
          %518 = vmatprep.subr.mxu0 0.0
          %519 = vmatpush1.msra.mxu0 %v497
          %520 = vmatprep.subr.mxu0 0.0
          %521 = vmatpush1.msra.mxu0 %v498
          %522 = vmatprep.subr.mxu0 0.0
          %523 = vmatpush1.msra.mxu0 %v499
          %524 = vmatprep.subr.mxu0 0.0
          %525 = vmatpush1.msra.mxu0 %v500
          %526 = vmatprep.subr.mxu0 0.0
          %527 = vmatpush1.msra.mxu0 %v501
          %528 = vmatprep.subr.mxu0 0.0
          %529 = vmatpush1.msra.mxu0 %v502
          %530 = vmatprep.subr.mxu0 0.0
          %531 = vmatpush1.msra.mxu0 %v503
          %532 = vmatprep.subr.mxu0 0.0
          %533 = vmatpush1.msra.mxu0 %v504
          %534 = vmatprep.subr.mxu0 0.0
          %535 = vmatpush1.msra.mxu0 %v505
          %536 = vmatprep.subr.mxu0 0.0
          %537 = vmatpush1.msra.mxu0 %v506
          %538 = vmatprep.subr.mxu0 0.0
          %539 = vmatpush1.msra.mxu0 %v507
          %540 = vmatprep.subr.mxu0 0.0
          %541 = vmatpush1.msra.mxu0 %v508
          %542 = vmatprep.subr.mxu0 0.0
          %543 = vmatpush1.msra.mxu0 0.0
          %544 = vmatprep.subr.mxu0 0.0
          %545 = vmatpush1.msra.mxu0 0.0
          %546 = vmatprep.subr.mxu0 0.0
          %547 = vmatpush1.msra.mxu0 0.0
          %548 = vmatprep.subr.mxu0 0.0
          %549 = vmatpush1.msra.mxu0 0.0
          %550 = vmatprep.subr.mxu0 0.0
          %551 = vmatpush1.msra.mxu0 0.0
          %552 = vmatprep.subr.mxu0 0.0
          %553 = vmatpush1.msra.mxu0 0.0
          %554 = vmatprep.subr.mxu0 0.0
          %555 = vmatpush1.msra.mxu0 0.0
          %556 = vmatprep.subr.mxu0 0.0
          %557 = vmatpush1.msra.mxu0 0.0
          %558 = vmatprep.subr.mxu0 0.0
          %559 = vmatpush1.msra.mxu0 0.0
          %560 = vmatprep.subr.mxu0 0.0
          %561 = vmatpush1.msra.mxu0 0.0
          %562 = vmatprep.subr.mxu0 0.0
          %563 = vmatpush1.msra.mxu0 0.0
          %564 = vmatprep.subr.mxu0 0.0
          %565 = vmatpush1.msra.mxu0 0.0
          %566 = vmatprep.subr.mxu0 0.0
          %567 = vmatpush1.msra.mxu0 0.0
          %568 = vmatprep.subr.mxu0 0.0
          %569 = vmatpush1.msra.mxu0 0.0
          %570 = vmatprep.subr.mxu0 0.0
          %571 = vmatpush1.msra.mxu0 0.0
          %572 = vmatprep.subr.mxu0 0.0
          %573 = vmatpush1.msra.mxu0 0.0
          %574 = vmatprep.mubr.f32.mxu0 0.0
          %575 = vmatmul.mubr.f32.gmra.mrb[0].mxu0 %v490
          %v576 = vpop.f32.mrb[0].mxu0
          %v577 = vadd.f32 %v509, %v576
          %v578 = vpop.f32.mrb[0].mxu0
          %579 = vdwg.mxu0
          %v580 = vlaneseq
          %v581 = vshrl.u32 %v580, 7
          %v582 = vsub.s32 %v581, %v389
          %vm583 = vcmp.eq.s32.totalorder %v582, 4294967295
          %s584 = sld [smem:[#allocation3]]
          %v585 = vstv %s584
          %v586 = vsel %vm583, %v585, 0.0
          %vm587 = vcmp.eq.s32.totalorder %v582, 0
          %s588 = sld [smem:[#allocation3 + $0x1]]
          %v589 = vstv %s588
          %v590 = vsel %vm587, %v589, %v586
          %vm591 = vcmp.eq.s32.totalorder %v582, 1
          %s592 = sld [smem:[#allocation3 + $0x2]]
          %v593 = vstv %s592
          %v594 = vsel %vm591, %v593, %v590
          %595 = vmatprep.subr.mxu0 0.0
          %596 = vmatpush1.msra.mxu0 %v594
          %597 = vmatprep.subr.mxu0 0.0
          %598 = vmatpush1.msra.mxu0 0.0
          %599 = vmatprep.subr.mxu0 0.0
          %600 = vmatpush1.msra.mxu0 0.0
          %601 = vmatprep.subr.mxu0 0.0
          %602 = vmatpush1.msra.mxu0 0.0
          %603 = vmatprep.subr.mxu0 0.0
          %604 = vmatpush1.msra.mxu0 0.0
          %605 = vmatprep.subr.mxu0 0.0
          %606 = vmatpush1.msra.mxu0 0.0
          %607 = vmatprep.subr.mxu0 0.0
          %608 = vmatpush1.msra.mxu0 0.0
          %609 = vmatprep.subr.mxu0 0.0
          %610 = vmatpush1.msra.mxu0 0.0
          %611 = vmatprep.subr.mxu0 0.0
          %612 = vmatpush1.msra.mxu0 0.0
          %613 = vmatprep.subr.mxu0 0.0
          %614 = vmatpush1.msra.mxu0 0.0
          %615 = vmatprep.subr.mxu0 0.0
          %616 = vmatpush1.msra.mxu0 0.0
          %617 = vmatprep.subr.mxu0 0.0
          %618 = vmatpush1.msra.mxu0 0.0
          %619 = vmatprep.subr.mxu0 0.0
          %620 = vmatpush1.msra.mxu0 0.0
          %621 = vmatprep.subr.mxu0 0.0
          %622 = vmatpush1.msra.mxu0 0.0
          %623 = vmatprep.subr.mxu0 0.0
          %624 = vmatpush1.msra.mxu0 0.0
          %625 = vmatprep.subr.mxu0 0.0
          %626 = vmatpush1.msra.mxu0 0.0
          %627 = vmatprep.subr.mxu0 0.0
          %628 = vmatpush1.msra.mxu0 0.0
          %629 = vmatprep.subr.mxu0 0.0
          %630 = vmatpush1.msra.mxu0 0.0
          %631 = vmatprep.subr.mxu0 0.0
          %632 = vmatpush1.msra.mxu0 0.0
          %633 = vmatprep.subr.mxu0 0.0
          %634 = vmatpush1.msra.mxu0 0.0
          %635 = vmatprep.subr.mxu0 0.0
          %636 = vmatpush1.msra.mxu0 0.0
          %637 = vmatprep.subr.mxu0 0.0
          %638 = vmatpush1.msra.mxu0 0.0
          %639 = vmatprep.subr.mxu0 0.0
          %640 = vmatpush1.msra.mxu0 0.0
          %641 = vmatprep.subr.mxu0 0.0
          %642 = vmatpush1.msra.mxu0 0.0
          %643 = vmatprep.subr.mxu0 0.0
          %644 = vmatpush1.msra.mxu0 0.0
          %645 = vmatprep.subr.mxu0 0.0
          %646 = vmatpush1.msra.mxu0 0.0
          %647 = vmatprep.subr.mxu0 0.0
          %648 = vmatpush1.msra.mxu0 0.0
          %649 = vmatprep.subr.mxu0 0.0
          %650 = vmatpush1.msra.mxu0 0.0
          %651 = vmatprep.subr.mxu0 0.0
          %652 = vmatpush1.msra.mxu0 0.0
          %653 = vmatprep.subr.mxu0 0.0
          %654 = vmatpush1.msra.mxu0 0.0
          %655 = vmatprep.subr.mxu0 0.0
          %656 = vmatpush1.msra.mxu0 0.0
          %657 = vmatprep.subr.mxu0 0.0
          %658 = vmatpush1.msra.mxu0 0.0
          %659 = vmatprep.mubr.f32.mxu0 0.0
          %660 = vmatmul.mubr.f32.gmra.mrb[0].mxu0 %v421
          %v661 = vpop.f32.mrb[0].mxu0
          %v662 = vadd.f32 0.0, %v661
          %v663 = vpop.f32.mrb[0].mxu0
          %664 = vdwg.mxu0
          %v665 = vadd.f32 %v577, %v662
          %v666 = vxor.u32 %v665, 2147483648
          %v667 = vmul.f32 %v666, 1.442695
          %v668 = vpow.pop %v667
          %v669 = vadd.f32 %v668, 1.0
          %v670 = vrcp.pop %v669
          %v671 = vmul.f32 1.0, %v670
          %672 = vst.msk [vmem:[%s280] sm:$0x1] %vm410, %v671
        $region56: #{_eca_forward.1} parent=43 // pred_fallthru
          _
        %s673 = sand.u32 %s174, 1
        %s674 = scalar_lea.sflag [#allocation4], %s673
        %s675 = sand.u32 %s174, 1
        %s676 = scalar_lea.vmem [#allocation6], %s675
        // Predicated region
        $region57: #{_eca_forward.1} parent=43 // pred_check
          %p677 = pneg %p184
        $region58: #{_eca_forward.1} parent=43 // pred_check_branch
          %679 = sbr.rel (%p677) target = $region60
        $region59: #{_eca_forward.1} parent=43 // pred_region
          %s681 = ssub.s32 16, 16
          %682 = vsyncadd %s674, %s681
          %s683 = smul.addr %s25, 16
          %s684 = scalar_lea.hbm %s6, %s683
          %s686 = sshll.u32 %s676, 4
          %s687 = int_to_ptr.vmem [resolvable:$true] %s686
          %689 = dma.vmem_to_hbm [thread:$0]  %s687, 16, %s684, %s674
        $region60: #{_eca_forward.1} parent=43 // pred_fallthru
          _
      $region44: #{_eca_forward.1} parent=5 // pred_fallthru
        _
      %p690 = scmp.le.s32.totalorder 2, %s16
      // Predicated region
      $region61: #{_eca_forward.1} parent=5 // pred_check
        %p691 = pneg %p690
      $region62: #{_eca_forward.1} parent=5 // pred_check_branch
        %693 = sbr.rel (%p691) target = $region64
      $region63: #{_eca_forward.1} parent=5 // pred_region
        %s694 = ssub.s32 %s16, 2
        // Predicated region
        $region65: #{_eca_forward.1} parent=63 // pred_check
          %p695 = pneg %p190
        $region66: #{_eca_forward.1} parent=63 // pred_check_branch
          %697 = sbr.rel (%p695) target = $region68
        $region67: #{_eca_forward.1} parent=63 // pred_region
          %s698 = sand.u32 %s175, 1
          %s699 = scalar_lea.sflag [#allocation4], %s698
          %s700 = sand.u32 %s175, 1
          %s701 = scalar_lea.vmem [#allocation6], %s700
          %702 = dma.done %s699, 16
        $region68: #{_eca_forward.1} parent=63 // pred_fallthru
          _
      $region64: #{_eca_forward.1} parent=5 // pred_fallthru
        _
    $region6: #{_eca_forward.1} parent=1 // loop_footer
      %s20 = sadd.s32 1, %s16
    $region7: #{_eca_forward.1} parent=1 // loop_footer_branch
      %15 = sbr.rel target = $region3
    $region8: #{_eca_forward.1} parent=1 // loop_exit
      _
    %703 = vsyncpa [#allocation4], 1
    %s704 = scalar_lea.sflag [#allocation4], 1
    %705 = vsyncpa %s704, 1
    %706 = vsyncpa [#allocation5], 1
    %s707 = scalar_lea.sflag [#allocation5], 1
    %708 = vsyncpa %s707, 1

</llo_original>
